<compile_context>
chip_gen: v7x
topology: tpu7x:2x2x1
jax: 0.10.0
libtpu: 0.0.40
codegen_flags: <defaults>
</compile_context>

<pallas_src>
import functools

import jax
import jax.numpy as jnp
from jax.experimental import pallas as pl
from jax.experimental.pallas import tpu as pltpu


def _round_up(x, m):
    return (x + m - 1) // m * m


def _vmem_capacity_bytes():
    """Physical VMEM of the current TPU generation (conservative fallback)."""
    try:
        return int(pltpu.get_tpu_info().vmem_capacity_bytes)
    except Exception:
        return 64 * 1024 * 1024  # assume v7x-class (smallest) if unknown


def _ffwd_kernel(x_ref, w1_ref, b1_ref, w2_ref, b2_ref, o_ref, acc_ref, *,
                 compute_dtype):
    # x_ref : (tm, Dp)   w1_ref : (Dp, th)   b1_ref : (1, th)
    # w2_ref: (th, Dp)   b2_ref : (1, Dp)    o_ref  : (tm, Dp)
    # acc_ref: (tm, Dp) f32 scratch, persistent across the H (reduction) axis.
    k = pl.program_id(1)

    x = x_ref[...]
    w1 = w1_ref[...]
    w2 = w2_ref[...]
    if compute_dtype is not None:
        x = x.astype(compute_dtype)
        w1 = w1.astype(compute_dtype)
        w2 = w2.astype(compute_dtype)

    # First linear for this H-slice + bias + ReLU (MXU, f32 accumulate).
    h = jnp.dot(x, w1, preferred_element_type=jnp.float32) + b1_ref[...]
    h = jnp.maximum(h, 0.0)

    # Partial second linear for this H-slice (MXU-native dtype, f32 acc).
    partial = jnp.dot(h.astype(w2.dtype), w2, preferred_element_type=jnp.float32)

    @pl.when(k == 0)
    def _():
        acc_ref[...] = partial          # direct init: saves a store+load

    @pl.when(k > 0)
    def _():
        acc_ref[...] += partial

    @pl.when(k == pl.num_programs(1) - 1)
    def _():
        # Fold b2 into the finalize step only (once per output tile).
        o_ref[...] = (acc_ref[...] + b2_ref[...]).astype(o_ref.dtype)


def _choose_tiles(M, Dp, Hp, itemsize, compute_itemsize):
    """MXU-aligned (tm, th), generation-aware, fits double-buffered VMEM."""
    cap = _vmem_capacity_bytes()
    vmem_limit = min(int(cap * 0.85), cap - 8 * 1024 * 1024)   # headroom for
    budget = vmem_limit - 8 * 1024 * 1024                      # Mosaic scratch

    # Sub-32-bit dtypes pack along sublanes: align rows to the packed tile.
    row_align = max(8, 32 // itemsize)

    # ~512 on v7x-class (64 MiB VMEM), 1024 on v5e/v6e-class (128 MiB VMEM).
    small_vmem = cap <= 80 * 1024 * 1024
    tm_cap = 512 if small_vmem else 1024
    tm = min(tm_cap, _round_up(max(M, row_align), row_align))

    # v7x has 2 TensorCores: keep >= 2 parallel M tiles when M is large.
    if small_vmem and M >= 1024:
        tm = min(tm, _round_up((M + 1) // 2, 256))

    # th candidates must divide Hp exactly (padded-H zeros are exact no-ops,
    # but garbage from a ragged H edge block would corrupt the reduction).
    th_candidates = sorted(
        {t for t in (Hp, 4096, 2048, 1024, 512, 256, 128)
         if t <= Hp and Hp % t == 0},
        reverse=True)

    def footprint(tm_, th_):
        dbuf = 2 * itemsize * (tm_ * Dp        # x tile
                               + Dp * th_      # W1 slice
                               + th_ * Dp      # W2 slice
                               + tm_ * Dp      # out tile
                               + th_ + Dp)     # b1 slice, b2
        acc = 4 * tm_ * Dp                     # f32 accumulator scratch
        interm = 4 * tm_ * th_ + compute_itemsize * tm_ * th_  # h + cast copy
        casts = 0
        if compute_itemsize != itemsize:       # bf16 copies of x / W1 / W2
            casts = compute_itemsize * (tm_ * Dp + Dp * th_ + th_ * Dp)
        return dbuf + acc + interm + casts

    # Prefer shrinking th before tm (tm sets the weight arithmetic intensity).
    tm_try = tm
    while True:
        for th_ in th_candidates:
            if footprint(tm_try, th_) <= budget:
                return tm_try, th_, vmem_limit
        if tm_try <= 64:
            return tm_try, th_candidates[-1], vmem_limit
        tm_try = max(64, tm_try // 2)


def pad_ffwd_params(w1, b1, w2, b2):
    """Pad weights/biases to 128-aligned shapes ONCE (model init, not per call).

    Weights are (in_features, out_features), i.e. already transposed relative
    to PyTorch's nn.Linear.weight, so y = x @ W + b.  Zero padding is an exact
    no-op for the MLP math.
    """
    D, H = w1.shape
    Dp = _round_up(D, 128)
    Hp = _round_up(H, 128)
    w1p = jnp.pad(w1, ((0, Dp - D), (0, Hp - H))) if (Dp != D or Hp != H) else w1
    w2p = jnp.pad(w2, ((0, Hp - H), (0, Dp - D))) if (Dp != D or Hp != H) else w2
    b1p = (jnp.pad(b1, (0, Hp - H)) if Hp != H else b1).reshape(1, Hp)
    b2p = (jnp.pad(b2, (0, Dp - D)) if Dp != D else b2).reshape(1, Dp)
    return w1p, b1p, w2p, b2p


def feedforward_pallas(x, w1p, b1p, w2p, b2p, *, tm=None, th=None,
                       compute_dtype=None):
    """x: (B, T, D).  Padded params from pad_ffwd_params (Dp x Hp, etc.)."""
    B, T, D = x.shape
    M = B * T
    Dp, Hp = w1p.shape
    assert b1p.shape == (1, Hp) and w2p.shape == (Hp, Dp) and b2p.shape == (1, Dp)

    itemsize = jnp.dtype(x.dtype).itemsize
    c_itemsize = (jnp.dtype(compute_dtype).itemsize
                  if compute_dtype is not None else itemsize)
    auto_tm, auto_th, vmem_limit = _choose_tiles(M, Dp, Hp, itemsize, c_itemsize)
    tm = auto_tm if tm is None else tm
    th = auto_th if th is None else th
    assert Hp % th == 0, "th must divide the (padded) hidden dim"

    x2 = x.reshape(M, D)
    need_pad = (D != Dp)
    if need_pad:
        # Only when D is not 128-aligned do we copy x (zeros keep the first
        # GEMM reduction exact).  Rows padded to a tm multiple -> exact grid.
        rows = _round_up(M, tm)
        x2 = jnp.pad(x2, ((0, rows - M), (0, Dp - D)))
    else:
        # Lane-dense already: no copy; ragged last M tile is masked by Pallas.
        rows = M

    grid = (pl.cdiv(rows, tm), Hp // th)
    kernel = functools.partial(_ffwd_kernel, compute_dtype=compute_dtype)

    out = pl.pallas_call(
        kernel,
        out_shape=jax.ShapeDtypeStruct((rows, Dp), x.dtype),
        grid_spec=pltpu.PrefetchScalarGridSpec(
            num_scalar_prefetch=0,
            grid=grid,
            in_specs=[
                pl.BlockSpec((tm, Dp), lambda i, k: (i, 0)),   # x row-tile
                pl.BlockSpec((Dp, th), lambda i, k: (0, k)),   # W1 H-slice
                pl.BlockSpec((1, th), lambda i, k: (0, k)),    # b1 H-slice
                pl.BlockSpec((th, Dp), lambda i, k: (k, 0)),   # W2 H-slice
                pl.BlockSpec((1, Dp), lambda i, k: (0, 0)),    # b2 (constant)
            ],
            out_specs=pl.BlockSpec((tm, Dp), lambda i, k: (i, 0)),
            scratch_shapes=[pltpu.VMEM((tm, Dp), jnp.float32)],
        ),
        compiler_params=pltpu.CompilerParams(
            dimension_semantics=("parallel", "arbitrary"),
            vmem_limit_bytes=int(vmem_limit),
        ),
    )(x2, w1p, b1p, w2p, b2p)

    if need_pad:
        out = out[:M, :D]
    return out.reshape(B, T, D)

    # TODO(synk): v7x fp8 (e4m3) weight storage with per-channel scales would
    # halve weight HBM/VMEM traffic further; int8 is the analogue on v5e/v6e.
    # TODO(synk): for very large D (>=8K) a 3-D grid tiling the output dim
    # would decouple the (tm, Dp) accumulator from full Dp.


def feedforward_ref(x, w1, b1, w2, b2):
    h = jnp.maximum(jnp.einsum("btd,dh->bth", x, w1) + b1, 0.0)
    return jnp.einsum("bth,hd->btd", h, w2) + b2


if __name__ == "__main__":
    key = jax.random.PRNGKey(0)

    def make_inputs(B, T, n_embd, dtype):
        hidden = 4 * n_embd
        kx, k1, k2, k3, k4 = jax.random.split(key, 5)
        x = jax.random.normal(kx, (B, T, n_embd), jnp.float32)
        w1 = jax.random.normal(k1, (n_embd, hidden), jnp.float32) * 0.05
        b1 = jax.random.normal(k2, (hidden,), jnp.float32) * 0.05
        w2 = jax.random.normal(k3, (hidden, n_embd), jnp.float32) * 0.05
        b2 = jax.random.normal(k4, (n_embd,), jnp.float32) * 0.05
        return tuple(a.astype(dtype) for a in (x, w1, b1, w2, b2))

    def run(x, w1, b1, w2, b2, **kw):
        params = pad_ffwd_params(w1, b1, w2, b2)   # once, at "init"
        return jax.block_until_ready(feedforward_pallas(x, *params, **kw))

    # Test 1: module-sized toy shapes (B=2, T=8, n_embd=32), f32, pad path.
    x, w1, b1, w2, b2 = make_inputs(2, 8, 32, jnp.float32)
    out = run(x, w1, b1, w2, b2)
    ref = feedforward_ref(x, w1, b1, w2, b2)
    assert out.shape == x.shape
    assert jnp.allclose(out, ref, atol=1e-2, rtol=1e-2)

    # Test 2: multi-step grid on both axes — exercises the H-reduction
    # accumulator (k=4 steps, direct init at k==0) and the parallel M axis.
    x, w1, b1, w2, b2 = make_inputs(2, 64, 128, jnp.float32)
    out = run(x, w1, b1, w2, b2, tm=64, th=128)
    ref = feedforward_ref(x, w1, b1, w2, b2)
    assert jnp.allclose(out, ref, atol=1e-2, rtol=1e-2)

    # Test 3: 128-aligned D with ragged M (no x copy, masked last M tile).
    x, w1, b1, w2, b2 = make_inputs(2, 50, 128, jnp.float32)
    out = run(x, w1, b1, w2, b2, tm=64, th=128)
    ref = feedforward_ref(x, w1, b1, w2, b2)
    assert jnp.allclose(out, ref, atol=1e-2, rtol=1e-2)

    # Test 4: bf16 activations/weights (MXU-native dtype on v6e/v7x).
    x, w1, b1, w2, b2 = make_inputs(2, 8, 32, jnp.bfloat16)
    out = run(x, w1, b1, w2, b2)
    ref = feedforward_ref(*(a.astype(jnp.float32) for a in (x, w1, b1, w2, b2)))
    assert jnp.allclose(out.astype(jnp.float32), ref, atol=8e-2, rtol=8e-2)

    # Test 5: f32 storage with in-kernel bf16 compute (v6e/v7x MXU fast path).
    x, w1, b1, w2, b2 = make_inputs(2, 64, 128, jnp.float32)
    out = run(x, w1, b1, w2, b2, compute_dtype=jnp.bfloat16)
    ref = feedforward_ref(x, w1, b1, w2, b2)
    assert jnp.allclose(out, ref, atol=8e-2, rtol=8e-2)

    print("KERNEL_OK")
</pallas_src>

<mosaic_0001>
module attributes {stable_mosaic.version = 11 : i64} {
  func.func @_ffwd_kernel(%arg0: i32, %arg1: i32, %arg2: memref<16x128xf32, #tpu.memory_space<vmem>>, %arg3: memref<128x128xf32, #tpu.memory_space<vmem>>, %arg4: memref<1x128xf32, #tpu.memory_space<vmem>>, %arg5: memref<128x128xf32, #tpu.memory_space<vmem>>, %arg6: memref<1x128xf32, #tpu.memory_space<vmem>>, %arg7: memref<16x128xf32, #tpu.memory_space<vmem>>, %arg8: memref<16x128xf32, #tpu.memory_space<vmem>>) attributes {dimension_semantics = [#tpu.dimension_semantics<parallel>, #tpu.dimension_semantics<arbitrary>], iteration_bounds = array<i64: 1, 1>, scalar_prefetch = 0 : i64, scratch_operands = 1 : i64, tpu.core_type = #tpu.core_type<tc>, window_params = [{transform_indices = @transform_0, window_bounds = array<i64: 16, 128>}, {transform_indices = @transform_1, window_bounds = array<i64: 128, 128>}, {transform_indices = @transform_2, window_bounds = array<i64: 1, 128>}, {transform_indices = @transform_3, window_bounds = array<i64: 128, 128>}, {pipeline_mode = #tpu.pipeline_mode<synchronous>, transform_indices = @transform_4, window_bounds = array<i64: 1, 128>}, {transform_indices = @transform_5, window_bounds = array<i64: 16, 128>}]} {
    %c0 = arith.constant 0 : index
    %c0_0 = arith.constant 0 : index
    %0 = vector.load %arg2[%c0, %c0_0] : memref<16x128xf32, #tpu.memory_space<vmem>>, vector<16x128xf32>
    %c0_1 = arith.constant 0 : index
    %c0_2 = arith.constant 0 : index
    %1 = vector.load %arg3[%c0_1, %c0_2] : memref<128x128xf32, #tpu.memory_space<vmem>>, vector<128x128xf32>
    %c0_3 = arith.constant 0 : index
    %c0_4 = arith.constant 0 : index
    %2 = vector.load %arg5[%c0_3, %c0_4] : memref<128x128xf32, #tpu.memory_space<vmem>>, vector<128x128xf32>
    %cst = arith.constant dense<0.000000e+00> : vector<16x128xf32>
    %3 = tpu.matmul %0, %1, %cst {dimension_numbers = #tpu.dot_dimension_numbers<[1], [0], [0], [1], [0, 0, 1, 1], [], []>} : vector<16x128xf32>, vector<128x128xf32>, vector<16x128xf32> -> vector<16x128xf32>
    %c0_5 = arith.constant 0 : index
    %c0_6 = arith.constant 0 : index
    %4 = vector.load %arg4[%c0_5, %c0_6] : memref<1x128xf32, #tpu.memory_space<vmem>>, vector<1x128xf32>
    %5 = vector.broadcast %4 : vector<1x128xf32> to vector<16x128xf32>
    %6 = arith.addf %3, %5 : vector<16x128xf32>
    %cst_7 = arith.constant 0.000000e+00 : f32
    %7 = vector.broadcast %cst_7 : f32 to vector<16x128xf32>
    %8 = arith.maximumf %6, %7 : vector<16x128xf32>
    %cst_8 = arith.constant dense<0.000000e+00> : vector<16x128xf32>
    %9 = tpu.matmul %8, %2, %cst_8 {dimension_numbers = #tpu.dot_dimension_numbers<[1], [0], [0], [1], [0, 0, 1, 1], [], []>} : vector<16x128xf32>, vector<128x128xf32>, vector<16x128xf32> -> vector<16x128xf32>
    %c0_i32 = arith.constant 0 : i32
    %10 = arith.cmpi eq, %arg1, %c0_i32 : i32
    %11 = arith.extui %10 : i1 to i32
    %c0_i32_9 = arith.constant 0 : i32
    %12 = arith.cmpi ne, %11, %c0_i32_9 : i32
    scf.if %12 {
      %c0_14 = arith.constant 0 : index
      %c0_15 = arith.constant 0 : index
      %19 = vector.load %arg8[%c0_14, %c0_15] : memref<16x128xf32, #tpu.memory_space<vmem>>, vector<16x128xf32>
      tpu.vector_store %arg8[%c0_14, %c0_15], %9 {strides = array<i32>} : memref<16x128xf32, #tpu.memory_space<vmem>>, vector<16x128xf32>,
    } else {
    }
    %c0_i32_10 = arith.constant 0 : i32
    %13 = arith.cmpi sgt, %arg1, %c0_i32_10 : i32
    %14 = arith.extui %13 : i1 to i32
    %c0_i32_11 = arith.constant 0 : i32
    %15 = arith.cmpi ne, %14, %c0_i32_11 : i32
    scf.if %15 {
      %c0_14 = arith.constant 0 : index
      %c0_15 = arith.constant 0 : index
      %19 = vector.load %arg8[%c0_14, %c0_15] : memref<16x128xf32, #tpu.memory_space<vmem>>, vector<16x128xf32>
      %20 = arith.addf %19, %9 : vector<16x128xf32>
      %c0_16 = arith.constant 0 : index
      %c0_17 = arith.constant 0 : index
      %21 = vector.load %arg8[%c0_16, %c0_17] : memref<16x128xf32, #tpu.memory_space<vmem>>, vector<16x128xf32>
      tpu.vector_store %arg8[%c0_16, %c0_17], %20 {strides = array<i32>} : memref<16x128xf32, #tpu.memory_space<vmem>>, vector<16x128xf32>,
    } else {
    }
    %c0_i32_12 = arith.constant 0 : i32
    %16 = arith.cmpi eq, %arg1, %c0_i32_12 : i32
    %17 = arith.extui %16 : i1 to i32
    %c0_i32_13 = arith.constant 0 : i32
    %18 = arith.cmpi ne, %17, %c0_i32_13 : i32
    scf.if %18 {
      %c0_14 = arith.constant 0 : index
      %c0_15 = arith.constant 0 : index
      %19 = vector.load %arg8[%c0_14, %c0_15] : memref<16x128xf32, #tpu.memory_space<vmem>>, vector<16x128xf32>
      %c0_16 = arith.constant 0 : index
      %c0_17 = arith.constant 0 : index
      %20 = vector.load %arg6[%c0_16, %c0_17] : memref<1x128xf32, #tpu.memory_space<vmem>>, vector<1x128xf32>
      %21 = vector.broadcast %20 : vector<1x128xf32> to vector<16x128xf32>
      %22 = arith.addf %19, %21 : vector<16x128xf32>
      %c0_18 = arith.constant 0 : index
      %c0_19 = arith.constant 0 : index
      %23 = vector.load %arg7[%c0_18, %c0_19] : memref<16x128xf32, #tpu.memory_space<vmem>>, vector<16x128xf32>
      tpu.vector_store %arg7[%c0_18, %c0_19], %22 {strides = array<i32>} : memref<16x128xf32, #tpu.memory_space<vmem>>, vector<16x128xf32>,
    } else {
    }
    return
  }
  func.func @transform_0(%arg0: i32, %arg1: i32) -> (i32, i32) {
    %c0_i32 = arith.constant 0 : i32
    %c0_i32_0 = arith.constant 0 : i32
    return %arg0, %c0_i32 : i32, i32
  }
  func.func @transform_1(%arg0: i32, %arg1: i32) -> (i32, i32) {
    %c0_i32 = arith.constant 0 : i32
    %c0_i32_0 = arith.constant 0 : i32
    return %c0_i32, %arg1 : i32, i32
  }
  func.func @transform_2(%arg0: i32, %arg1: i32) -> (i32, i32) {
    %c0_i32 = arith.constant 0 : i32
    %c0_i32_0 = arith.constant 0 : i32
    return %c0_i32, %arg1 : i32, i32
  }
  func.func @transform_3(%arg0: i32, %arg1: i32) -> (i32, i32) {
    %c0_i32 = arith.constant 0 : i32
    %c0_i32_0 = arith.constant 0 : i32
    return %arg1, %c0_i32 : i32, i32
  }
  func.func @transform_4(%arg0: i32, %arg1: i32) -> (i32, i32) {
    %c0_i32 = arith.constant 0 : i32
    %c0_i32_0 = arith.constant 0 : i32
    %c0_i32_1 = arith.constant 0 : i32
    return %c0_i32, %c0_i32_0 : i32, i32
  }
  func.func @transform_5(%arg0: i32, %arg1: i32) -> (i32, i32) {
    %c0_i32 = arith.constant 0 : i32
    %c0_i32_0 = arith.constant 0 : i32
    return %arg0, %c0_i32 : i32, i32
  }
}

</mosaic_0001>

<llo_original>
// kernel: tpu_custom_call.1
$region0: #{tpu_custom_call.1}
  #allocation0 [shape = 'u32[]', space=smem, size = 0x4, offset = 0x4, fixed_abs, tag = 'smem constant byte address 0x4 - core index']
  #allocation1 [shape = 'u32[144,128]{1,0:T(1,128)}', space=vmem, size = 0x12000, scoped, tag = 'internal scratch']
  #allocation2 [shape = 'f32[16,128]{1,0:T(8,128)}', space=vmem, size = 0x2000, scoped, tag = 'scratch operand']
  %s0 = inlined_call_operand.hbm [shape: f32[16,128], index: 0, kind: input, shape index: {}]
  %s1 = inlined_call_operand.hbm [shape: f32[128,128], index: 1, kind: input, shape index: {}]
  %s2 = inlined_call_operand.vmem [shape: f32[1,128], index: 2, kind: input, shape index: {}]
  %s3 = inlined_call_operand.hbm [shape: f32[128,128], index: 3, kind: input, shape index: {}]
  %s4 = inlined_call_operand.vmem [shape: f32[1,128], index: 4, kind: input, shape index: {}]
  %s5 = inlined_call_operand.hbm [shape: f32[16,128], index: 5, kind: output, shape index: {}]
  %s6 = sld [smem:[#allocation0]]
  $region54: #{tpu_custom_call.1} parent=0
    _
  %s8 = ssub.s32 1, %s6
  %s9 = scalar_select 0, %s8, %s6
  $region1: #{tpu_custom_call.1} parent=0
    #allocation3 [shape = 'u8[8192]{0}', space=vmem, size = 0x2000, scoped, tag = 'input window, operand 0, single buffered']
    #allocation4 [shape = 's32[1]{0}', space=sflag, size = 0x4, scoped, tag = 'scoped memory for tpu_custom_call.1']
    #allocation5 [shape = 's32[1]{0}', space=sflag, size = 0x4, scoped, tag = 'scoped memory for tpu_custom_call.1']
    #allocation6 [shape = 'u8[65536]{0}', space=vmem, size = 0x10000, scoped, tag = 'input window, operand 1, single buffered']
    #allocation7 [shape = 's32[1]{0}', space=sflag, size = 0x4, scoped, tag = 'scoped memory for tpu_custom_call.1']
    #allocation8 [shape = 'u8[65536]{0}', space=vmem, size = 0x10000, scoped, tag = 'input window, operand 3, single buffered']
    #allocation9 [shape = 'u8[8192]{0}', space=vmem, size = 0x2000, scoped, tag = 'output window, operand 0, single buffered']
    %10 = vsyncpa [#allocation4], 0
    %11 = vsyncpa [#allocation7], 0
    %12 = vsyncpa [#allocation5], 0
    // Predicated region
    $region2: #{tpu_custom_call.1} parent=1 // pred_check
      _
    $region3: #{tpu_custom_call.1} parent=1 // pred_check_branch
      %14 = sbr.rel (0) target = $region5
    $region4: #{tpu_custom_call.1} parent=1 // pred_region
      %s16 = ssub.s32 256, 256
      %17 = vsyncadd [#allocation4], %s16
      %s18 = sshll.u32 [#allocation3], 4
      %s19 = int_to_ptr.vmem [resolvable:$true] %s18
      %24 = dma.hbm_to_vmem [thread:$0]  %s0, 256, %s19, [#allocation4], 128, 128, 8
    $region5: #{tpu_custom_call.1} parent=1 // pred_fallthru
      _
    // Predicated region
    $region6: #{tpu_custom_call.1} parent=1 // pred_check
      _
    $region7: #{tpu_custom_call.1} parent=1 // pred_check_branch
      %26 = sbr.rel (0) target = $region9
    $region8: #{tpu_custom_call.1} parent=1 // pred_region
      %s28 = ssub.s32 2048, 2048
      %29 = vsyncadd [#allocation7], %s28
      %s30 = sshll.u32 [#allocation6], 4
      %s31 = int_to_ptr.vmem [resolvable:$true] %s30
      %36 = dma.hbm_to_vmem [thread:$0]  %s1, 2048, %s31, [#allocation7], 128, 128, 8
    $region9: #{tpu_custom_call.1} parent=1 // pred_fallthru
      _
    // Predicated region
    $region10: #{tpu_custom_call.1} parent=1 // pred_check
      _
    $region11: #{tpu_custom_call.1} parent=1 // pred_check_branch
      %38 = sbr.rel (0) target = $region13
    $region12: #{tpu_custom_call.1} parent=1 // pred_region
      _
    $region13: #{tpu_custom_call.1} parent=1 // pred_fallthru
      _
    // Predicated region
    $region14: #{tpu_custom_call.1} parent=1 // pred_check
      _
    $region15: #{tpu_custom_call.1} parent=1 // pred_check_branch
      %40 = sbr.rel (0) target = $region17
    $region16: #{tpu_custom_call.1} parent=1 // pred_region
      %s42 = ssub.s32 2048, 2048
      %43 = vsyncadd [#allocation7], %s42
      %s44 = sshll.u32 [#allocation8], 4
      %s45 = int_to_ptr.vmem [resolvable:$true] %s44
      %50 = dma.hbm_to_vmem [thread:$0]  %s3, 2048, %s45, [#allocation7], 128, 128, 8
    $region17: #{tpu_custom_call.1} parent=1 // pred_fallthru
      _
    // Predicated region
    $region18: #{tpu_custom_call.1} parent=1 // pred_check
      _
    $region19: #{tpu_custom_call.1} parent=1 // pred_check_branch
      %52 = sbr.rel (0) target = $region21
    $region20: #{tpu_custom_call.1} parent=1 // pred_region
      _
    $region21: #{tpu_custom_call.1} parent=1 // pred_fallthru
      _
    // Predicated region
    $region22: #{tpu_custom_call.1} parent=1 // pred_check
      _
    $region23: #{tpu_custom_call.1} parent=1 // pred_check_branch
      %54 = sbr.rel (0) target = $region25
    $region24: #{tpu_custom_call.1} parent=1 // pred_region
      %55 = dma.done [#allocation4], 256
    $region25: #{tpu_custom_call.1} parent=1 // pred_fallthru
      _
    // Predicated region
    $region26: #{tpu_custom_call.1} parent=1 // pred_check
      _
    $region27: #{tpu_custom_call.1} parent=1 // pred_check_branch
      %57 = sbr.rel (0) target = $region29
    $region28: #{tpu_custom_call.1} parent=1 // pred_region
      %58 = dma.done [#allocation7], 2048
    $region29: #{tpu_custom_call.1} parent=1 // pred_fallthru
      _
    // Predicated region
    $region30: #{tpu_custom_call.1} parent=1 // pred_check
      _
    $region31: #{tpu_custom_call.1} parent=1 // pred_check_branch
      %60 = sbr.rel (0) target = $region33
    $region32: #{tpu_custom_call.1} parent=1 // pred_region
      %61 = dma.done [#allocation7], 2048
    $region33: #{tpu_custom_call.1} parent=1 // pred_fallthru
      _
    %v62 = vld [vmem:[#allocation3] sm:$0xff]
    %v63 = vld [vmem:[#allocation3 + $0x8] sm:$0xff]
    %v64 = vld [vmem:[#allocation6] sm:$0xff]
    %v65 = vld [vmem:[#allocation6 + $0x8] sm:$0xff]
    %v66 = vld [vmem:[#allocation6 + $0x10] sm:$0xff]
    %v67 = vld [vmem:[#allocation6 + $0x18] sm:$0xff]
    %v68 = vld [vmem:[#allocation6 + $0x20] sm:$0xff]
    %v69 = vld [vmem:[#allocation6 + $0x28] sm:$0xff]
    %v70 = vld [vmem:[#allocation6 + $0x30] sm:$0xff]
    %v71 = vld [vmem:[#allocation6 + $0x38] sm:$0xff]
    %v72 = vld [vmem:[#allocation6 + $0x40] sm:$0xff]
    %v73 = vld [vmem:[#allocation6 + $0x48] sm:$0xff]
    %v74 = vld [vmem:[#allocation6 + $0x50] sm:$0xff]
    %v75 = vld [vmem:[#allocation6 + $0x58] sm:$0xff]
    %v76 = vld [vmem:[#allocation6 + $0x60] sm:$0xff]
    %v77 = vld [vmem:[#allocation6 + $0x68] sm:$0xff]
    %v78 = vld [vmem:[#allocation6 + $0x70] sm:$0xff]
    %v79 = vld [vmem:[#allocation6 + $0x78] sm:$0xff]
    %v80 = vld [vmem:[#allocation8] sm:$0xff]
    %v81 = vld [vmem:[#allocation8 + $0x8] sm:$0xff]
    %v82 = vld [vmem:[#allocation8 + $0x10] sm:$0xff]
    %v83 = vld [vmem:[#allocation8 + $0x18] sm:$0xff]
    %v84 = vld [vmem:[#allocation8 + $0x20] sm:$0xff]
    %v85 = vld [vmem:[#allocation8 + $0x28] sm:$0xff]
    %v86 = vld [vmem:[#allocation8 + $0x30] sm:$0xff]
    %v87 = vld [vmem:[#allocation8 + $0x38] sm:$0xff]
    %v88 = vld [vmem:[#allocation8 + $0x40] sm:$0xff]
    %v89 = vld [vmem:[#allocation8 + $0x48] sm:$0xff]
    %v90 = vld [vmem:[#allocation8 + $0x50] sm:$0xff]
    %v91 = vld [vmem:[#allocation8 + $0x58] sm:$0xff]
    %v92 = vld [vmem:[#allocation8 + $0x60] sm:$0xff]
    %v93 = vld [vmem:[#allocation8 + $0x68] sm:$0xff]
    %v94 = vld [vmem:[#allocation8 + $0x70] sm:$0xff]
    %v95 = vld [vmem:[#allocation8 + $0x78] sm:$0xff]
    %v96 = vld [vmem:[%s2] sm:$0x1]
    %v98 = vlaneseq
    %v99 = vshrl.u32 %v98, 7
    %v100 = vsub.s32 0, %v99
    %v101 = vrot.slane %v96, %v100
    %103 = vmatprep.subr.mxu0 0.0
    %104 = vmatpush1.msra.mxu0 %v64
    %105 = vmatprep.subr.mxu0 0.0
    %106 = vmatpush1.msra.mxu0 %v65
    %107 = vmatprep.subr.mxu0 0.0
    %108 = vmatpush1.msra.mxu0 %v66
    %109 = vmatprep.subr.mxu0 0.0
    %110 = vmatpush1.msra.mxu0 %v67
    %111 = vmatprep.subr.mxu0 0.0
    %112 = vmatpush1.msra.mxu0 %v68
    %113 = vmatprep.subr.mxu0 0.0
    %114 = vmatpush1.msra.mxu0 %v69
    %115 = vmatprep.subr.mxu0 0.0
    %116 = vmatpush1.msra.mxu0 %v70
    %117 = vmatprep.subr.mxu0 0.0
    %118 = vmatpush1.msra.mxu0 %v71
    %119 = vmatprep.subr.mxu0 0.0
    %120 = vmatpush1.msra.mxu0 %v72
    %121 = vmatprep.subr.mxu0 0.0
    %122 = vmatpush1.msra.mxu0 %v73
    %123 = vmatprep.subr.mxu0 0.0
    %124 = vmatpush1.msra.mxu0 %v74
    %125 = vmatprep.subr.mxu0 0.0
    %126 = vmatpush1.msra.mxu0 %v75
    %127 = vmatprep.subr.mxu0 0.0
    %128 = vmatpush1.msra.mxu0 %v76
    %129 = vmatprep.subr.mxu0 0.0
    %130 = vmatpush1.msra.mxu0 %v77
    %131 = vmatprep.subr.mxu0 0.0
    %132 = vmatpush1.msra.mxu0 %v78
    %133 = vmatprep.subr.mxu0 0.0
    %134 = vmatpush1.msra.mxu0 %v79
    %135 = vmatprep.subr.mxu0 0.0
    %136 = vmatpush1.msra.mxu0 0.0
    %137 = vmatprep.subr.mxu0 0.0
    %138 = vmatpush1.msra.mxu0 0.0
    %139 = vmatprep.subr.mxu0 0.0
    %140 = vmatpush1.msra.mxu0 0.0
    %141 = vmatprep.subr.mxu0 0.0
    %142 = vmatpush1.msra.mxu0 0.0
    %143 = vmatprep.subr.mxu0 0.0
    %144 = vmatpush1.msra.mxu0 0.0
    %145 = vmatprep.subr.mxu0 0.0
    %146 = vmatpush1.msra.mxu0 0.0
    %147 = vmatprep.subr.mxu0 0.0
    %148 = vmatpush1.msra.mxu0 0.0
    %149 = vmatprep.subr.mxu0 0.0
    %150 = vmatpush1.msra.mxu0 0.0
    %151 = vmatprep.subr.mxu0 0.0
    %152 = vmatpush1.msra.mxu0 0.0
    %153 = vmatprep.subr.mxu0 0.0
    %154 = vmatpush1.msra.mxu0 0.0
    %155 = vmatprep.subr.mxu0 0.0
    %156 = vmatpush1.msra.mxu0 0.0
    %157 = vmatprep.subr.mxu0 0.0
    %158 = vmatpush1.msra.mxu0 0.0
    %159 = vmatprep.subr.mxu0 0.0
    %160 = vmatpush1.msra.mxu0 0.0
    %161 = vmatprep.subr.mxu0 0.0
    %162 = vmatpush1.msra.mxu0 0.0
    %163 = vmatprep.subr.mxu0 0.0
    %164 = vmatpush1.msra.mxu0 0.0
    %165 = vmatprep.subr.mxu0 0.0
    %166 = vmatpush1.msra.mxu0 0.0
    %167 = vmatprep.mubr.f32.mxu0 0.0
    %168 = vmatmul.mubr.f32.gmra.mrb[0].mxu0 %v62
    %v169 = vpop.f32.mrb[0].mxu0
    %v170 = vadd.f32 %v101, %v169
    %v171 = vpop.f32.mrb[0].mxu0
    %172 = vmatprep.mubr.f32.mxu0 0.0
    %173 = vmatmul.mubr.f32.gmra.mrb[0].mxu0 %v63
    %v174 = vpop.f32.mrb[0].mxu0
    %v175 = vadd.f32 %v101, %v174
    %v176 = vpop.f32.mrb[0].mxu0
    %177 = vdwg.mxu0
    %v178 = vmax.f32 %v170, 0.0
    %v179 = vmax.f32 %v175, 0.0
    %180 = vmatprep.subr.mxu0 0.0
    %181 = vmatpush1.msra.mxu0 %v80
    %182 = vmatprep.subr.mxu0 0.0
    %183 = vmatpush1.msra.mxu0 %v81
    %184 = vmatprep.subr.mxu0 0.0
    %185 = vmatpush1.msra.mxu0 %v82
    %186 = vmatprep.subr.mxu0 0.0
    %187 = vmatpush1.msra.mxu0 %v83
    %188 = vmatprep.subr.mxu0 0.0
    %189 = vmatpush1.msra.mxu0 %v84
    %190 = vmatprep.subr.mxu0 0.0
    %191 = vmatpush1.msra.mxu0 %v85
    %192 = vmatprep.subr.mxu0 0.0
    %193 = vmatpush1.msra.mxu0 %v86
    %194 = vmatprep.subr.mxu0 0.0
    %195 = vmatpush1.msra.mxu0 %v87
    %196 = vmatprep.subr.mxu0 0.0
    %197 = vmatpush1.msra.mxu0 %v88
    %198 = vmatprep.subr.mxu0 0.0
    %199 = vmatpush1.msra.mxu0 %v89
    %200 = vmatprep.subr.mxu0 0.0
    %201 = vmatpush1.msra.mxu0 %v90
    %202 = vmatprep.subr.mxu0 0.0
    %203 = vmatpush1.msra.mxu0 %v91
    %204 = vmatprep.subr.mxu0 0.0
    %205 = vmatpush1.msra.mxu0 %v92
    %206 = vmatprep.subr.mxu0 0.0
    %207 = vmatpush1.msra.mxu0 %v93
    %208 = vmatprep.subr.mxu0 0.0
    %209 = vmatpush1.msra.mxu0 %v94
    %210 = vmatprep.subr.mxu0 0.0
    %211 = vmatpush1.msra.mxu0 %v95
    %212 = vmatprep.subr.mxu0 0.0
    %213 = vmatpush1.msra.mxu0 0.0
    %214 = vmatprep.subr.mxu0 0.0
    %215 = vmatpush1.msra.mxu0 0.0
    %216 = vmatprep.subr.mxu0 0.0
    %217 = vmatpush1.msra.mxu0 0.0
    %218 = vmatprep.subr.mxu0 0.0
    %219 = vmatpush1.msra.mxu0 0.0
    %220 = vmatprep.subr.mxu0 0.0
    %221 = vmatpush1.msra.mxu0 0.0
    %222 = vmatprep.subr.mxu0 0.0
    %223 = vmatpush1.msra.mxu0 0.0
    %224 = vmatprep.subr.mxu0 0.0
    %225 = vmatpush1.msra.mxu0 0.0
    %226 = vmatprep.subr.mxu0 0.0
    %227 = vmatpush1.msra.mxu0 0.0
    %228 = vmatprep.subr.mxu0 0.0
    %229 = vmatpush1.msra.mxu0 0.0
    %230 = vmatprep.subr.mxu0 0.0
    %231 = vmatpush1.msra.mxu0 0.0
    %232 = vmatprep.subr.mxu0 0.0
    %233 = vmatpush1.msra.mxu0 0.0
    %234 = vmatprep.subr.mxu0 0.0
    %235 = vmatpush1.msra.mxu0 0.0
    %236 = vmatprep.subr.mxu0 0.0
    %237 = vmatpush1.msra.mxu0 0.0
    %238 = vmatprep.subr.mxu0 0.0
    %239 = vmatpush1.msra.mxu0 0.0
    %240 = vmatprep.subr.mxu0 0.0
    %241 = vmatpush1.msra.mxu0 0.0
    %242 = vmatprep.subr.mxu0 0.0
    %243 = vmatpush1.msra.mxu0 0.0
    %244 = vmatprep.mubr.f32.mxu0 0.0
    %245 = vmatmul.mubr.f32.gmra.mrb[0].mxu0 %v178
    %v246 = vpop.f32.mrb[0].mxu0
    %v247 = vadd.f32 0.0, %v246
    %v248 = vpop.f32.mrb[0].mxu0
    %249 = vmatprep.mubr.f32.mxu0 0.0
    %250 = vmatmul.mubr.f32.gmra.mrb[0].mxu0 %v179
    %v251 = vpop.f32.mrb[0].mxu0
    %v252 = vadd.f32 0.0, %v251
    %v253 = vpop.f32.mrb[0].mxu0
    %254 = vdwg.mxu0
    %p255 = scmp.eq.s32.totalorder 0, 0
    // Predicated region
    $region34: #{tpu_custom_call.1} parent=1 // pred_check
      %p256 = pneg %p255
    $region35: #{tpu_custom_call.1} parent=1 // pred_check_branch
      %258 = sbr.rel (%p256) target = $region37
    $region36: #{tpu_custom_call.1} parent=1 // pred_region
      %259 = vst [vmem:[#allocation2] sm:$0xff] %v247
      %260 = vst [vmem:[#allocation2 + $0x8] sm:$0xff] %v252
    $region37: #{tpu_custom_call.1} parent=1 // pred_fallthru
      _
    %p261 = scmp.gt.s32.totalorder 0, 0
    // Predicated region
    $region38: #{tpu_custom_call.1} parent=1 // pred_check
      %p262 = pneg %p261
    $region39: #{tpu_custom_call.1} parent=1 // pred_check_branch
      %264 = sbr.rel (%p262) target = $region41
    $region40: #{tpu_custom_call.1} parent=1 // pred_region
      %v265 = vld [vmem:[#allocation2] sm:$0xff]
      %v266 = vld [vmem:[#allocation2 + $0x8] sm:$0xff]
      %v267 = vadd.f32 %v265, %v247
      %v268 = vadd.f32 %v266, %v252
      %269 = vst [vmem:[#allocation2] sm:$0xff] %v267
      %270 = vst [vmem:[#allocation2 + $0x8] sm:$0xff] %v268
    $region41: #{tpu_custom_call.1} parent=1 // pred_fallthru
      _
    // Predicated region
    $region42: #{tpu_custom_call.1} parent=1 // pred_check
      %p271 = pneg %p255
    $region43: #{tpu_custom_call.1} parent=1 // pred_check_branch
      %273 = sbr.rel (%p271) target = $region45
    $region44: #{tpu_custom_call.1} parent=1 // pred_region
      %v274 = vld [vmem:[#allocation2] sm:$0xff]
      %v275 = vld [vmem:[#allocation2 + $0x8] sm:$0xff]
      %v276 = vld [vmem:[%s4] sm:$0x1]
      %v278 = vlaneseq
      %v279 = vshrl.u32 %v278, 7
      %v280 = vsub.s32 0, %v279
      %v281 = vrot.slane %v276, %v280
      %v283 = vadd.f32 %v274, %v281
      %v284 = vadd.f32 %v275, %v281
      %285 = vst [vmem:[#allocation9] sm:$0xff] %v283
      %286 = vst [vmem:[#allocation9 + $0x8] sm:$0xff] %v284
    $region45: #{tpu_custom_call.1} parent=1 // pred_fallthru
      _
    // Predicated region
    $region46: #{tpu_custom_call.1} parent=1 // pred_check
      _
    $region47: #{tpu_custom_call.1} parent=1 // pred_check_branch
      %288 = sbr.rel (0) target = $region49
    $region48: #{tpu_custom_call.1} parent=1 // pred_region
      %s290 = ssub.s32 256, 256
      %291 = vsyncadd [#allocation5], %s290
      %s292 = sshll.u32 [#allocation9], 4
      %s293 = int_to_ptr.vmem [resolvable:$true] %s292
      %298 = dma.vmem_to_hbm [thread:$0]  %s293, 256, %s5, [#allocation5], 128, 128, 8
    $region49: #{tpu_custom_call.1} parent=1 // pred_fallthru
      _
    // Predicated region
    $region50: #{tpu_custom_call.1} parent=1 // pred_check
      _
    $region51: #{tpu_custom_call.1} parent=1 // pred_check_branch
      %300 = sbr.rel (0) target = $region53
    $region52: #{tpu_custom_call.1} parent=1 // pred_region
      %301 = dma.done [#allocation5], 256
    $region53: #{tpu_custom_call.1} parent=1 // pred_fallthru
      _
    %302 = vsyncpa [#allocation4], 1
    %303 = vsyncpa [#allocation7], 1
    %304 = vsyncpa [#allocation5], 1

</llo_original>
